<compile_context>
chip_gen: v7x
topology: tpu7x:2x2x1
jax: 0.10.0
libtpu: 0.0.40
codegen_flags: <defaults>
</compile_context>

<pallas_src>
import functools
import numpy as np
import jax
import jax.numpy as jnp
from jax.experimental import pallas as pl
from jax.experimental.pallas import tpu as pltpu


def _round_up(x, m):
    return -(-x // m) * m


# -----------------------------------------------------------------------------
# Pallas kernel: tiled MXU matmul, fused bias + activation + optional residual.
# bf16 operands, f32 accumulation.
# -----------------------------------------------------------------------------
_FULL_K_MAX = 2560   # full-K tile if padded K <= this (A tile 512x2560 bf16 = 2.5 MiB)
_TK_CHUNK = 2048     # K chunk for the rare long-K layer (mv_back, K = 25*128*V)
_TM_MAX = 512


def _mm_kernel(a_ref, b_ref, bias_ref, *rest, act, has_res, nk):
    if has_res:
        res_ref, *rest = rest
    if nk == 1:
        (o_ref,) = rest
        r = jnp.dot(a_ref[...], b_ref[...], preferred_element_type=jnp.float32)
        r = r + bias_ref[...].astype(jnp.float32)
        if has_res:
            r = r + res_ref[...].astype(jnp.float32)
        if act == "relu":
            r = jnp.maximum(r, 0.0)
        elif act == "sigmoid":
            r = jax.nn.sigmoid(r)
        o_ref[...] = r.astype(o_ref.dtype)
    else:
        o_ref, acc_ref = rest
        k = pl.program_id(2)

        @pl.when(k == 0)
        def _():
            acc_ref[...] = jnp.broadcast_to(
                bias_ref[...].astype(jnp.float32), acc_ref.shape)

        acc_ref[...] += jnp.dot(a_ref[...], b_ref[...],
                                preferred_element_type=jnp.float32)

        @pl.when(k == nk - 1)
        def _():
            r = acc_ref[...]
            if has_res:
                r = r + res_ref[...].astype(jnp.float32)
            if act == "relu":
                r = jnp.maximum(r, 0.0)
            elif act == "sigmoid":
                r = jax.nn.sigmoid(r)
            o_ref[...] = r.astype(o_ref.dtype)


def _pad_k(K):
    Kp = _round_up(K, 128)
    if Kp > _FULL_K_MAX:
        Kp = _round_up(K, _TK_CHUNK)
    return Kp


def _matmul_fused(a, wp, bp, res, *, act, cout, out_f32):
    """a: (M, K) bf16 patches, wp: (Kp, Np) bf16 packed weight, bp: (1, Np) f32 bias."""
    M, K = a.shape
    Kp, Np = wp.shape

    TK = Kp if Kp <= _FULL_K_MAX else _TK_CHUNK
    nk = Kp // TK
    TN = 256 if Np % 256 == 0 else 128
    nj = Np // TN
    if M <= _TM_MAX:
        TM = _round_up(M, 8)
        Mp = TM
    else:
        TM = _TM_MAX
        Mp = _round_up(M, TM)
    ni = Mp // TM

    a_p = a.astype(jnp.bfloat16)
    if (Mp, Kp) != (M, K):
        a_p = jnp.pad(a_p, ((0, Mp - M), (0, Kp - K)))
    if res is not None:
        res = res.astype(jnp.bfloat16)
        if res.shape != (Mp, Np):
            res = jnp.pad(res, ((0, Mp - M), (0, Np - cout)))

    out_dtype = jnp.float32 if out_f32 else jnp.bfloat16
    kernel = functools.partial(_mm_kernel, act=act, has_res=res is not None, nk=nk)

    in_specs = [
        pl.BlockSpec((TM, TK), lambda i, j, k: (i, k)),
        pl.BlockSpec((TK, TN), lambda i, j, k: (k, j)),
        pl.BlockSpec((1, TN), lambda i, j, k: (0, j)),
    ]
    operands = [a_p, wp, bp]
    if res is not None:
        in_specs.append(pl.BlockSpec((TM, TN), lambda i, j, k: (i, j)))
        operands.append(res)
    scratch = [] if nk == 1 else [pltpu.VMEM((TM, TN), jnp.float32)]

    out = pl.pallas_call(
        kernel,
        out_shape=jax.ShapeDtypeStruct((Mp, Np), out_dtype),
        grid_spec=pltpu.PrefetchScalarGridSpec(
            num_scalar_prefetch=0,
            grid=(ni, nj, nk),
            in_specs=in_specs,
            out_specs=pl.BlockSpec((TM, TN), lambda i, j, k: (i, j)),
            scratch_shapes=scratch),
        compiler_params=pltpu.CompilerParams(
            dimension_semantics=("parallel", "parallel", "arbitrary"),
            vmem_limit_bytes=40 * 1024 * 1024),
    )(*operands)

    if (Mp, Np) != (M, cout):
        out = out[:M, :cout]
    return out


# -----------------------------------------------------------------------------
# Conv2d = im2col (glue) + Pallas fused matmul (hot path)
# -----------------------------------------------------------------------------
@functools.partial(
    jax.jit,
    static_argnames=("kh", "kw", "cout", "stride", "padding", "dilation",
                     "act", "out_f32"))
def _conv2d_impl(x, wp, bp, residual, *, kh, kw, cout, stride, padding,
                 dilation, act, out_f32):
    x = x.astype(jnp.bfloat16)
    N, H, W, C = x.shape
    eff_kh = dilation * (kh - 1) + 1
    eff_kw = dilation * (kw - 1) + 1
    Ho = (H + 2 * padding - eff_kh) // stride + 1
    Wo = (W + 2 * padding - eff_kw) // stride + 1

    if kh == 1 and kw == 1 and stride == 1 and padding == 0:
        pat = x.reshape(N * H * W, C)
    else:
        xp = jnp.pad(x, ((0, 0), (padding, padding), (padding, padding), (0, 0)))
        cols = []
        for dy in range(kh):
            for dx in range(kw):
                cols.append(
                    xp[:,
                       dy * dilation: dy * dilation + (Ho - 1) * stride + 1: stride,
                       dx * dilation: dx * dilation + (Wo - 1) * stride + 1: stride,
                       :])
        pat = jnp.concatenate(cols, axis=-1).reshape(N * Ho * Wo, kh * kw * C)

    res2 = None
    if residual is not None:
        res2 = residual.reshape(N * Ho * Wo, cout)

    y = _matmul_fused(pat, wp, bp, res2, act=act, cout=cout, out_f32=out_f32)
    return y.reshape(N, Ho, Wo, cout)


def conv2d(x, p, *, stride=1, padding=0, dilation=1, act="none",
           residual=None, out_f32=False):
    return _conv2d_impl(x, p["wp"], p["bp"], residual,
                        kh=p["kh"], kw=p["kw"], cout=p["cout"],
                        stride=stride, padding=padding, dilation=dilation,
                        act=act, out_f32=out_f32)


# -----------------------------------------------------------------------------
# Glue ops (layout plumbing, no Pallas needed)
# -----------------------------------------------------------------------------
def maxpool_3x3_s2(x):  # NHWC, kernel 3, stride 2, pad 1 (ResNet stem)
    return jax.lax.reduce_window(
        x, jnp.array(-jnp.inf, x.dtype), jax.lax.max,
        window_dimensions=(1, 3, 3, 1), window_strides=(1, 2, 2, 1),
        padding=((0, 0), (1, 1), (1, 1), (0, 0)))


@functools.lru_cache(maxsize=None)
def _pool_matrix(in_size, out_size):
    P = np.zeros((out_size, in_size), np.float32)
    for i in range(out_size):
        s = (i * in_size) // out_size
        e = -(-((i + 1) * in_size) // out_size)
        P[i, s:e] = 1.0 / (e - s)
    return jnp.asarray(P)


def adaptive_avg_pool(x, out_h, out_w):  # PyTorch AdaptiveAvgPool2d semantics
    _, H, W, _ = x.shape
    Ph = _pool_matrix(H, out_h)
    Pw = _pool_matrix(W, out_w)
    y = jnp.einsum('oh,bhwc->bowc', Ph, x)
    return jnp.einsum('pw,bowc->bopc', Pw, y).astype(jnp.bfloat16)


@functools.lru_cache(maxsize=None)
def _bilinear_matrix(in_size, out_size):  # align_corners=False (F.interpolate default)
    A = np.zeros((out_size, in_size), np.float32)
    if in_size == 1:
        A[:, 0] = 1.0
        return jnp.asarray(A)
    scale = in_size / out_size
    for i in range(out_size):
        src = (i + 0.5) * scale - 0.5
        src = min(max(src, 0.0), in_size - 1)
        lo = int(np.floor(src))
        hi = min(lo + 1, in_size - 1)
        w = src - lo
        A[i, lo] += 1.0 - w
        A[i, hi] += w
    return jnp.asarray(A)


def bilinear_resize(x, out_h, out_w):
    _, H, W, _ = x.shape
    Ah = _bilinear_matrix(H, out_h)
    Aw = _bilinear_matrix(W, out_w)
    y = jnp.einsum('oh,bhwc->bowc', Ah, x)
    return jnp.einsum('pw,bowc->bopc', Aw, y).astype(jnp.bfloat16)


def project_to_ground_plane(feats, h_gp, input_size, output_size, hm_size):
    # TODO(synk): project_to_ground_plane_pytorch source is not provided; this is a
    # bilinear homography warp of each view's feature map onto an hm_size ground grid
    # (XLA gather, not Pallas).
    feats = feats.astype(jnp.float32)
    B, V, fh, fw, C = feats.shape
    in_h, in_w = input_size
    out_h, out_w = output_size
    hm_h, hm_w = hm_size
    ys, xs = jnp.meshgrid(jnp.arange(hm_h, dtype=jnp.float32),
                          jnp.arange(hm_w, dtype=jnp.float32), indexing='ij')
    gx = (xs + 0.5) * (out_w / hm_w) - 0.5
    gy = (ys + 0.5) * (out_h / hm_h) - 0.5
    pts = jnp.stack([gx.ravel(), gy.ravel(),
                     jnp.ones(hm_h * hm_w, jnp.float32)], axis=0)  # (3, P)

    def warp_one(feat, Hm):
        ip = Hm @ pts
        ix = ip[0] / (ip[2] + 1e-8)
        iy = ip[1] / (ip[2] + 1e-8)
        sx_ = (ix + 0.5) * (fw / in_w) - 0.5
        sy_ = (iy + 0.5) * (fh / in_h) - 0.5
        x0 = jnp.floor(sx_)
        y0 = jnp.floor(sy_)
        wx = sx_ - x0
        wy = sy_ - y0

        def gather(yy, xx):
            valid = (xx >= 0) & (xx <= fw - 1) & (yy >= 0) & (yy <= fh - 1)
            xi = jnp.clip(xx, 0, fw - 1).astype(jnp.int32)
            yi = jnp.clip(yy, 0, fh - 1).astype(jnp.int32)
            return feat[yi, xi] * valid[:, None].astype(feat.dtype)

        v00 = gather(y0, x0)
        v01 = gather(y0, x0 + 1)
        v10 = gather(y0 + 1, x0)
        v11 = gather(y0 + 1, x0 + 1)
        top = v00 * (1 - wx)[:, None] + v01 * wx[:, None]
        bot = v10 * (1 - wx)[:, None] + v11 * wx[:, None]
        return (top * (1 - wy)[:, None] + bot * wy[:, None]).reshape(hm_h, hm_w, C)

    return jax.vmap(jax.vmap(warp_one))(feats, h_gp)


# -----------------------------------------------------------------------------
# Parameters (deterministic synthetic init; BN folded; weights pre-packed)
# -----------------------------------------------------------------------------
class KeyGen:
    def __init__(self, seed):
        self.key = jax.random.PRNGKey(seed)

    def __call__(self):
        self.key, sub = jax.random.split(self.key)
        return sub


def _pack_conv(w, b):
    kh, kw, cin, cout = w.shape
    K = kh * kw * cin
    Kp = _pad_k(K)
    Np = _round_up(cout, 128)
    wp = jnp.zeros((Kp, Np), jnp.float32)
    wp = wp.at[:K, :cout].set(w.reshape(K, cout)).astype(jnp.bfloat16)
    bp = jnp.zeros((1, Np), jnp.float32).at[0, :cout].set(b)
    return {"wp": wp, "bp": bp, "kh": kh, "kw": kw, "cout": cout}


def conv_params(kg, kh, kw, cin, cout, bias=True, bn=False):
    w = 0.05 * jax.random.normal(kg(), (kh, kw, cin, cout), jnp.float32)
    b = (0.05 * jax.random.normal(kg(), (cout,), jnp.float32)
         if bias else jnp.zeros((cout,), jnp.float32))
    if bn:
        # TODO(synk): BatchNorm reproduced in inference mode (folded running stats);
        # training-mode batch statistics are not reproduced.
        gamma = 1.0 + 0.05 * jax.random.normal(kg(), (cout,), jnp.float32)
        beta = 0.05 * jax.random.normal(kg(), (cout,), jnp.float32)
        mean = jnp.zeros((cout,), jnp.float32)
        var = jnp.ones((cout,), jnp.float32)
        scale = gamma / jnp.sqrt(var + 1e-5)
        w = w * scale
        b = (b - mean) * scale + beta
    return _pack_conv(w, b)


# -----------------------------------------------------------------------------
# MultiNet
# -----------------------------------------------------------------------------
class MultiNet:
    SIZES = [2 ** i for i in list(range(8))[::-1][:4]]  # [128, 64, 32, 16]

    def __init__(self, hm_size, homography_input_size, homography_output_size,
                 nb_ch_out, model_image_pred=False, nb_view=3):
        self.nb_view = nb_view
        self.hm_size = hm_size
        self.homography_input_size = homography_input_size
        self.homography_output_size = homography_output_size
        self.nb_ch_out = nb_ch_out
        self.image_pred = model_image_pred
        self.frontend_feature_outsize = 128
        self.output_layer_dim = 32
        backend_feat = [128, 128, 64, 32]
        mv = 128  # multiview_features

        kg = KeyGen(0)
        P = {}
        # --- ResNet-34 frontend (children[:-4]): conv1/bn1/relu/maxpool, layer1, layer2
        # TODO(synk): pretrained ImageNet weights replaced with deterministic random init.
        P["conv1"] = conv_params(kg, 7, 7, 3, 64, bias=False, bn=True)
        P["layer1"] = [{"conv1": conv_params(kg, 3, 3, 64, 64, bias=False, bn=True),
                        "conv2": conv_params(kg, 3, 3, 64, 64, bias=False, bn=True)}
                       for _ in range(3)]
        layer2 = []
        for i in range(4):
            cin = 64 if i == 0 else 128
            blk = {"conv1": conv_params(kg, 3, 3, cin, 128, bias=False, bn=True),
                   "conv2": conv_params(kg, 3, 3, 128, 128, bias=False, bn=True)}
            if i == 0:
                blk["down"] = conv_params(kg, 1, 1, 64, 128, bias=False, bn=True)
            layer2.append(blk)
        P["layer2"] = layer2
        # --- img classifier (only used if model_image_pred) ---
        P["img_cls1"] = conv_params(kg, 1, 1, backend_feat[0], backend_feat[1], bias=True)
        P["img_cls2"] = conv_params(kg, 1, 1, backend_feat[1], 1, bias=False)
        # --- multiview layers ---
        P["mv_front"] = conv_params(kg, 1, 1, self.frontend_feature_outsize, mv, bias=True)
        P["mv_back"] = conv_params(kg, 5, 5, mv * nb_view, mv * 2, bias=True, bn=True)
        # --- MultiScaleBackend(256, [128,128,64,32], out_features=32) ---
        scales = []
        for _ in self.SIZES:
            convs, cin = [], mv * 2
            for cout in backend_feat:
                convs.append(conv_params(kg, 3, 3, cin, cout, bias=True, bn=True))
                cin = cout
            scales.append(convs)
        P["scales"] = scales
        P["bottleneck"] = conv_params(kg, 1, 1, backend_feat[-1] * 4,
                                      self.output_layer_dim, bias=True)
        # --- output layer ---
        P["out"] = conv_params(kg, 3, 3, self.output_layer_dim, nb_ch_out, bias=True)
        self.P = P

    # ---- frontend ----
    def _basic_block(self, x, blk, stride):
        y = conv2d(x, blk["conv1"], stride=stride, padding=1, act="relu")
        if "down" in blk:
            idt = conv2d(x, blk["down"], stride=stride, padding=0, act="none")
        else:
            idt = x
        # residual add + ReLU fused into the second conv's Pallas epilogue
        return conv2d(y, blk["conv2"], stride=1, padding=1, act="relu", residual=idt)

    def _frontend(self, x):  # x: (B*V, H, W, 3)
        P = self.P
        y = conv2d(x, P["conv1"], stride=2, padding=3, act="relu")
        y = maxpool_3x3_s2(y)
        for blk in P["layer1"]:
            y = self._basic_block(y, blk, stride=1)
        for i, blk in enumerate(P["layer2"]):
            y = self._basic_block(y, blk, stride=2 if i == 0 else 1)
        return y

    # ---- MultiScaleBackend ----
    def _multiscale_backend(self, x):  # x: (B, h, w, 256)
        P = self.P
        h, w = x.shape[1], x.shape[2]
        outs = []
        for size, convs in zip(self.SIZES, P["scales"]):
            y = adaptive_avg_pool(x, size, size)
            for cp in convs:  # 3x3, dilation=2, padding=2, BN+ReLU
                y = conv2d(y, cp, padding=2, dilation=2, act="relu")
            outs.append(bilinear_resize(y, h, w))
        cat = jnp.concatenate(outs, axis=-1)
        return conv2d(cat, P["bottleneck"], act="relu")

    # ---- full forward (PyTorch-style NCHW in/out) ----
    def __call__(self, x, h_groundplane, roi):
        P = self.P
        B, V, C, H, W = x.shape
        x_ = jnp.transpose(x.reshape(B * V, C, H, W), (0, 2, 3, 1))   # NHWC
        fx = self._frontend(x_.astype(jnp.bfloat16))                  # (B*V, h', w', 128)

        if self.image_pred:
            ic = jnp.maximum(fx, 0.0)
            ic = conv2d(ic, P["img_cls1"], act="relu")
            ic = conv2d(ic, P["img_cls2"], act="sigmoid", out_f32=True)
            img_pred = ic[..., 0].reshape(B, V, fx.shape[1], fx.shape[2])
        else:
            img_pred = None

        feats = fx.reshape(B, V, *fx.shape[1:])
        gp = project_to_ground_plane(feats, h_groundplane,
                                     self.homography_input_size,
                                     self.homography_output_size,
                                     self.hm_size)                    # (B,V,hm,hm,128)
        gpx = gp.reshape(B * V, *gp.shape[2:])
        mv = conv2d(gpx, P["mv_front"], act="none")
        mv = mv.reshape(B, V, *mv.shape[1:])
        # NCHW x.view(B, V*ch, h, w) == concatenating views along channel axis
        mv = jnp.concatenate([mv[:, i] for i in range(V)], axis=-1)   # (B, hm, hm, V*128)
        mv = conv2d(mv, P["mv_back"], padding=2, act="relu")
        sx = self._multiscale_backend(mv)                             # (B, hm, hm, 32)
        out = conv2d(sx, P["out"], padding=1, act="sigmoid", out_f32=True)

        to_nchw = lambda t: jnp.transpose(t.astype(jnp.float32), (0, 3, 1, 2))
        return to_nchw(out), img_pred, to_nchw(fx), to_nchw(sx)


# -----------------------------------------------------------------------------
if __name__ == "__main__":
    B, V, C, H, W = 1, 3, 3, 32, 32
    HM = (8, 8)
    HOMO_IN = (32, 32)
    HOMO_OUT = (32, 32)
    NB_CH_OUT = 1

    key = jax.random.PRNGKey(0)
    kx, khh = jax.random.split(key)
    x = jax.random.normal(kx, (B, V, C, H, W), jnp.float32)
    h_gp = jnp.tile(jnp.eye(3, dtype=jnp.float32), (B, V, 1, 1))
    h_gp = h_gp + 0.01 * jax.random.normal(khh, (B, V, 3, 3), jnp.float32)
    roi = jnp.ones((B, 1, *HM), jnp.float32)  # unused by forward (as in PyTorch)

    model = MultiNet(HM, HOMO_IN, HOMO_OUT, NB_CH_OUT,
                     model_image_pred=False, nb_view=V)
    out, img_pred, fx, sx = model(x, h_gp, roi)
    jax.block_until_ready((out, fx, sx))

    assert out.shape == (B, NB_CH_OUT, *HM), out.shape
    assert fx.shape == (B * V, 128, H // 8, W // 8), fx.shape
    assert sx.shape == (B, 32, *HM), sx.shape
    assert img_pred is None
    assert bool(jnp.all(jnp.isfinite(out))) and bool(jnp.all((out >= 0) & (out <= 1)))
    print("KERNEL_OK")
</pallas_src>

<mosaic_0001>
module attributes {stable_mosaic.version = 11 : i64} {
  func.func @_mm_kernel(%arg0: i32, %arg1: i32, %arg2: i32, %arg3: memref<512x256xbf16, #tpu.memory_space<vmem>>, %arg4: memref<256x128xbf16, #tpu.memory_space<vmem>>, %arg5: memref<1x128xf32, #tpu.memory_space<vmem>>, %arg6: memref<512x128xbf16, #tpu.memory_space<vmem>>) attributes {dimension_semantics = [#tpu.dimension_semantics<parallel>, #tpu.dimension_semantics<parallel>, #tpu.dimension_semantics<arbitrary>], iteration_bounds = array<i64: 2, 1, 1>, scalar_prefetch = 0 : i64, scratch_operands = 0 : i64, tpu.core_type = #tpu.core_type<tc>, window_params = [{transform_indices = @transform_0, window_bounds = array<i64: 512, 256>}, {transform_indices = @transform_1, window_bounds = array<i64: 256, 128>}, {transform_indices = @transform_2, window_bounds = array<i64: 1, 128>}, {transform_indices = @transform_3, window_bounds = array<i64: 512, 128>}]} {
    %c0 = arith.constant 0 : index
    %c0_0 = arith.constant 0 : index
    %0 = vector.load %arg3[%c0, %c0_0] : memref<512x256xbf16, #tpu.memory_space<vmem>>, vector<512x256xbf16>
    %c0_1 = arith.constant 0 : index
    %c0_2 = arith.constant 0 : index
    %1 = vector.load %arg4[%c0_1, %c0_2] : memref<256x128xbf16, #tpu.memory_space<vmem>>, vector<256x128xbf16>
    %cst = arith.constant dense<0.000000e+00> : vector<512x128xf32>
    %2 = tpu.matmul %0, %1, %cst {dimension_numbers = #tpu.dot_dimension_numbers<[1], [0], [0], [1], [0, 0, 1, 1], [], []>} : vector<512x256xbf16>, vector<256x128xbf16>, vector<512x128xf32> -> vector<512x128xf32>
    %c0_3 = arith.constant 0 : index
    %c0_4 = arith.constant 0 : index
    %3 = vector.load %arg5[%c0_3, %c0_4] : memref<1x128xf32, #tpu.memory_space<vmem>>, vector<1x128xf32>
    %4 = vector.broadcast %3 : vector<1x128xf32> to vector<512x128xf32>
    %5 = arith.addf %2, %4 : vector<512x128xf32>
    %cst_5 = arith.constant 0.000000e+00 : f32
    %6 = vector.broadcast %cst_5 : f32 to vector<512x128xf32>
    %7 = arith.maximumf %5, %6 : vector<512x128xf32>
    %8 = arith.truncf %7 : vector<512x128xf32> to vector<512x128xbf16>
    %c0_6 = arith.constant 0 : index
    %c0_7 = arith.constant 0 : index
    %9 = vector.load %arg6[%c0_6, %c0_7] : memref<512x128xbf16, #tpu.memory_space<vmem>>, vector<512x128xbf16>
    tpu.vector_store %arg6[%c0_6, %c0_7], %8 {strides = array<i32>} : memref<512x128xbf16, #tpu.memory_space<vmem>>, vector<512x128xbf16>,
    return
  }
  func.func @transform_0(%arg0: i32, %arg1: i32, %arg2: i32) -> (i32, i32) {
    %c0_i32 = arith.constant 0 : i32
    return %arg0, %arg2 : i32, i32
  }
  func.func @transform_1(%arg0: i32, %arg1: i32, %arg2: i32) -> (i32, i32) {
    %c0_i32 = arith.constant 0 : i32
    return %arg2, %arg1 : i32, i32
  }
  func.func @transform_2(%arg0: i32, %arg1: i32, %arg2: i32) -> (i32, i32) {
    %c0_i32 = arith.constant 0 : i32
    %c0_i32_0 = arith.constant 0 : i32
    return %c0_i32, %arg1 : i32, i32
  }
  func.func @transform_3(%arg0: i32, %arg1: i32, %arg2: i32) -> (i32, i32) {
    %c0_i32 = arith.constant 0 : i32
    return %arg0, %arg1 : i32, i32
  }
}

</mosaic_0001>

<llo_original>
// kernel: _conv2d_impl.1
$region0: #{_conv2d_impl.1}
  #allocation0 [shape = 'u32[]', space=smem, size = 0x4, offset = 0x4, fixed_abs, tag = 'smem constant byte address 0x4 - core index']
  #allocation1 [shape = 'u32[144,128]{1,0:T(1,128)}', space=vmem, size = 0x12000, scoped, tag = 'internal scratch']
  %s0 = inlined_call_operand.vmem [shape: bf16[1024,256], index: 0, kind: input, shape index: {}]
  %s1 = inlined_call_operand.vmem [shape: bf16[256,128], index: 1, kind: input, shape index: {}]
  %s2 = inlined_call_operand.vmem [shape: f32[1,128], index: 2, kind: input, shape index: {}]
  %s3 = inlined_call_operand.vmem [shape: bf16[1024,128], index: 3, kind: output, shape index: {}]
  %s4 = sld [smem:[#allocation0]]
  $region45: #{_conv2d_impl.1} parent=0
    _
  %s6 = ssub.s32 1, %s4
  %s7 = scalar_select 0, %s6, %s4
  loop: start=0, step=1, limit=4
  $region2: #{_conv2d_impl.1} parent=0 // loop_pre_header
    _
  $region3: #{_conv2d_impl.1} parent=0 // loop_header
    %s9 = sphi 0, %s13
    %p10 = scmp.ge.s32.totalorder %s9, 4
    %s16 = sphi 0, %s35
    %s17 = sphi 0, %s31
    %s18 = sphi 0, %s27
    %s19 = sphi 0, %s16
    %s20 = sphi 0, %s17
    %s21 = sphi 0, %s18
    %s22 = sphi 0, %s19
    %s23 = sphi 0, %s20
    %s24 = sphi 0, %s21
    %s40 = sphi 0, %s42
    %s43 = sphi 0, %s40
    %s44 = sphi 0, %s43
    %s60 = sphi 0, %s44
    %s68 = sphi 0, %s70
    %s71 = sphi 0, %s68
    %s72 = sphi 0, %s71
    %s88 = sphi 0, %s72
    %s94 = sphi 0, %s96
    %s97 = sphi 0, %s94
    %s98 = sphi 0, %s97
    %s114 = sphi 0, %s98
    %s122 = sphi 0, %s124
    %s125 = sphi 0, %s122
    %s126 = sphi 0, %s125
    %s142 = sphi 0, %s126
  $region4: #{_conv2d_impl.1} parent=0 // loop_header_branch
    %12 = sbr.rel (%p10) target = $region8
  $region5: #{_conv2d_impl.1} parent=0 // loop_body
    %s14 = ssub.s32 %s9, 1
    %s15 = ssub.s32 %s9, 2
    %s25 = sadd.s32 1, %s18
    %p26 = scmp.ge.s32.totalorder %s25, 1
    %s27 = scalar_select %p26, 0, %s25
    %s28 = sadd.s32 1, %s17
    %s29 = scalar_select %p26, %s28, %s17
    %p30 = scmp.ge.s32.totalorder %s29, 1
    %s31 = scalar_select %p30, 0, %s29
    %s32 = sadd.s32 1, %s16
    %s33 = scalar_select %p30, %s32, %s16
    %p34 = scmp.ge.s32.totalorder %s33, 2
    %s35 = scalar_select %p34, 0, %s33
    %s36 = ssub.s32 %s16, %s35
    %s37 = ssub.s32 %s18, %s27
    %s38 = sor.u32 %s36, %s37
    %p39 = scmp.eq.s32.totalorder %s38, 0
    %s41 = sadd.s32 %s40, 1
    %s42 = scalar_select %p39, %s40, %s41
    %p45 = pneg %p39
    %p46 = scmp.eq.s32.totalorder %s9, 1
    %p47 = por %p45, %p46
    %p48 = scmp.ne.s32.totalorder %s40, %s43
    %p49 = scmp.eq.s32.totalorder %s9, 0
    %p50 = por %p48, %p49
    %p51 = scmp.ne.s32.totalorder %s40, %s43
    %p52 = scmp.eq.s32.totalorder %s14, 1
    %p53 = por %p51, %p52
    %p54 = scmp.ne.s32.totalorder %s43, %s44
    %p55 = scmp.eq.s32.totalorder %s14, 0
    %p56 = por %p54, %p55
    %p57 = scmp.ne.s32.totalorder %s43, %s44
    %p58 = scmp.eq.s32.totalorder %s15, 1
    %p59 = por %p57, %p58
    %p61 = scmp.ne.s32.totalorder %s44, %s60
    %p62 = scmp.eq.s32.totalorder %s15, 0
    %p63 = por %p61, %p62
    %s64 = ssub.s32 %s18, %s27
    %s65 = ssub.s32 %s17, %s31
    %s66 = sor.u32 %s64, %s65
    %p67 = scmp.eq.s32.totalorder %s66, 0
    %s69 = sadd.s32 %s68, 1
    %s70 = scalar_select %p67, %s68, %s69
    %p73 = pneg %p67
    %p74 = scmp.eq.s32.totalorder %s9, 1
    %p75 = por %p73, %p74
    %p76 = scmp.ne.s32.totalorder %s68, %s71
    %p77 = scmp.eq.s32.totalorder %s9, 0
    %p78 = por %p76, %p77
    %p79 = scmp.ne.s32.totalorder %s68, %s71
    %p80 = scmp.eq.s32.totalorder %s14, 1
    %p81 = por %p79, %p80
    %p82 = scmp.ne.s32.totalorder %s71, %s72
    %p83 = scmp.eq.s32.totalorder %s14, 0
    %p84 = por %p82, %p83
    %p85 = scmp.ne.s32.totalorder %s71, %s72
    %p86 = scmp.eq.s32.totalorder %s15, 1
    %p87 = por %p85, %p86
    %p89 = scmp.ne.s32.totalorder %s72, %s88
    %p90 = scmp.eq.s32.totalorder %s15, 0
    %p91 = por %p89, %p90
    %s92 = ssub.s32 %s17, %s31
    %p93 = scmp.eq.s32.totalorder %s92, 0
    %s95 = sadd.s32 %s94, 1
    %s96 = scalar_select %p93, %s94, %s95
    %p99 = pneg %p93
    %p100 = scmp.eq.s32.totalorder %s9, 1
    %p101 = por %p99, %p100
    %p102 = scmp.ne.s32.totalorder %s94, %s97
    %p103 = scmp.eq.s32.totalorder %s9, 0
    %p104 = por %p102, %p103
    %p105 = scmp.ne.s32.totalorder %s94, %s97
    %p106 = scmp.eq.s32.totalorder %s14, 1
    %p107 = por %p105, %p106
    %p108 = scmp.ne.s32.totalorder %s97, %s98
    %p109 = scmp.eq.s32.totalorder %s14, 0
    %p110 = por %p108, %p109
    %p111 = scmp.ne.s32.totalorder %s97, %s98
    %p112 = scmp.eq.s32.totalorder %s15, 1
    %p113 = por %p111, %p112
    %p115 = scmp.ne.s32.totalorder %s98, %s114
    %p116 = scmp.eq.s32.totalorder %s15, 0
    %p117 = por %p115, %p116
    %s118 = ssub.s32 %s16, %s35
    %s119 = ssub.s32 %s17, %s31
    %s120 = sor.u32 %s118, %s119
    %p121 = scmp.eq.s32.totalorder %s120, 0
    %s123 = sadd.s32 %s122, 1
    %s124 = scalar_select %p121, %s122, %s123
    %p127 = pneg %p121
    %p128 = scmp.eq.s32.totalorder %s9, 1
    %p129 = por %p127, %p128
    %p130 = scmp.ne.s32.totalorder %s122, %s125
    %p131 = scmp.eq.s32.totalorder %s9, 0
    %p132 = por %p130, %p131
    %p133 = scmp.ne.s32.totalorder %s122, %s125
    %p134 = scmp.eq.s32.totalorder %s14, 1
    %p135 = por %p133, %p134
    %p136 = scmp.ne.s32.totalorder %s125, %s126
    %p137 = scmp.eq.s32.totalorder %s14, 0
    %p138 = por %p136, %p137
    %p139 = scmp.ne.s32.totalorder %s125, %s126
    %p140 = scmp.eq.s32.totalorder %s15, 1
    %p141 = por %p139, %p140
    %p143 = scmp.ne.s32.totalorder %s126, %s142
    %p144 = scmp.eq.s32.totalorder %s15, 0
    %p145 = por %p143, %p144
    %p146 = scmp.le.s32.totalorder 1, %s9
    %p147 = scmp.lt.s32.totalorder %s9, 3
    %p148 = pnand %p146, %p147
    %p149 = pneg %p148
    // Predicated region
    $region9: #{_conv2d_impl.1} parent=5 // pred_check
      _
    $region10: #{_conv2d_impl.1} parent=5 // pred_check_branch
      %151 = sbr.rel (%p148) target = $region12
    $region11: #{_conv2d_impl.1} parent=5 // pred_region
      %s152 = ssub.s32 %s9, 1
      // Predicated region
      $region13: #{_conv2d_impl.1} parent=11 // pred_check
        %p153 = pneg %p84
      $region14: #{_conv2d_impl.1} parent=11 // pred_check_branch
        %155 = sbr.rel (%p153) target = $region16
      $region15: #{_conv2d_impl.1} parent=11 // pred_region
        %s156 = smul.u32 32, %s21
        %p157 = scmp.lt.s32.totalorder %s156, 31
        %s158 = scalar_select %p157, %s156, 31
        %p159 = scmp.lt.s32.totalorder %s20, 0
        %s160 = scalar_select %p159, %s20, 0
        %s161 = sadd.s32 %s160, %s158
        %s162 = smul.addr %s161, 4
        %s163 = scalar_lea.vmem %s1, %s162
        %s164 = smul.u32 32, %s21
      $region16: #{_conv2d_impl.1} parent=11 // pred_fallthru
        _
      // Predicated region
      $region17: #{_conv2d_impl.1} parent=11 // pred_check
        %p165 = pneg %p110
      $region18: #{_conv2d_impl.1} parent=11 // pred_check_branch
        %167 = sbr.rel (%p165) target = $region20
      $region19: #{_conv2d_impl.1} parent=11 // pred_region
        %p168 = scmp.lt.s32.totalorder %s20, 0
        %s169 = scalar_select %p168, %s20, 0
        %s170 = scalar_lea.vmem %s2, %s169
      $region20: #{_conv2d_impl.1} parent=11 // pred_fallthru
        _
    $region12: #{_conv2d_impl.1} parent=5 // pred_fallthru
      _
    %p171 = scmp.lt.s32.totalorder %s9, 2
    // Predicated region
    $region21: #{_conv2d_impl.1} parent=5 // pred_check
      %p172 = pneg %p171
    $region22: #{_conv2d_impl.1} parent=5 // pred_check_branch
      %174 = sbr.rel (%p172) target = $region24
    $region23: #{_conv2d_impl.1} parent=5 // pred_region
      // Predicated region
      $region25: #{_conv2d_impl.1} parent=23 // pred_check
        %p175 = pneg %p50
      $region26: #{_conv2d_impl.1} parent=23 // pred_check_branch
        %177 = sbr.rel (%p175) target = $region28
      $region27: #{_conv2d_impl.1} parent=23 // pred_region
        %s178 = smul.u32 64, %s16
        %s179 = smul.u32 2, %s18
        %p180 = scmp.lt.s32.totalorder %s178, 127
        %s181 = scalar_select %p180, %s178, 127
        %p182 = scmp.lt.s32.totalorder %s179, 1
        %s183 = scalar_select %p182, %s179, 1
        %s184 = smul.addr %s181, 2
        %s185 = sadd.s32 %s183, %s184
        %s186 = smul.addr %s185, 4
        %s187 = scalar_lea.vmem %s0, %s186
        %s188 = smul.u32 64, %s16
        %s189 = smul.u32 2, %s18
      $region28: #{_conv2d_impl.1} parent=23 // pred_fallthru
        _
    $region24: #{_conv2d_impl.1} parent=5 // pred_fallthru
      _
    %p190 = scmp.le.s32.totalorder 1, %s9
    %p191 = scmp.lt.s32.totalorder %s9, 3
    %p192 = pnand %p190, %p191
    %p193 = pneg %p192
    // Predicated region
    $region29: #{_conv2d_impl.1} parent=5 // pred_check
      _
    $region30: #{_conv2d_impl.1} parent=5 // pred_check_branch
      %195 = sbr.rel (%p192) target = $region32
    $region31: #{_conv2d_impl.1} parent=5 // pred_region
      %s196 = ssub.s32 %s9, 1
      %s197 = smul.u32 64, %s19
      %s198 = smul.u32 2, %s21
      %p199 = scmp.lt.s32.totalorder %s197, 127
      %s200 = scalar_select %p199, %s197, 127
      %p201 = scmp.lt.s32.totalorder %s198, 1
      %s202 = scalar_select %p201, %s198, 1
      %s203 = smul.addr %s200, 2
      %s204 = sadd.s32 %s202, %s203
      %s205 = smul.addr %s204, 4
      %s206 = scalar_lea.vmem %s0, %s205
      %p207 = pneg %p56
      %p208 = pneg %p53
      %s209 = smul.u32 32, %s21
      %p210 = scmp.lt.s32.totalorder %s209, 31
      %s211 = scalar_select %p210, %s209, 31
      %p212 = scmp.lt.s32.totalorder %s20, 0
      %s213 = scalar_select %p212, %s20, 0
      %s214 = sadd.s32 %s213, %s211
      %s215 = smul.addr %s214, 4
      %s216 = scalar_lea.vmem %s1, %s215
      %p217 = pneg %p84
      %p218 = pneg %p81
      %p219 = scmp.lt.s32.totalorder %s20, 0
      %s220 = scalar_select %p219, %s20, 0
      %s221 = scalar_lea.vmem %s2, %s220
      %p222 = pneg %p110
      %p223 = pneg %p107
      %p224 = pneg %p138
      %p225 = pneg %p135
      %s226 = smul.u32 64, %s19
      %p227 = scmp.lt.s32.totalorder %s226, 127
      %s228 = scalar_select %p227, %s226, 127
      %p229 = scmp.lt.s32.totalorder %s20, 0
      %s230 = scalar_select %p229, %s20, 0
      %s231 = sadd.s32 %s230, %s228
      %s232 = smul.addr %s231, 4
      %s233 = scalar_lea.vmem %s3, %s232
      %s234 = smul.u32 64, %s19
      %s235 = smul.u32 2, %s21
      %p236 = scmp.lt.s32.totalorder %s234, 127
      %s237 = scalar_select %p236, %s234, 127
      %p238 = scmp.lt.s32.totalorder %s235, 1
      %s239 = scalar_select %p238, %s235, 1
      %s240 = smul.addr %s237, 2
      %s241 = sadd.s32 %s239, %s240
      %s242 = smul.addr %s241, 4
      %s243 = scalar_lea.vmem %s0, %s242
      %s244 = smul.u32 64, %s19
      %s245 = smul.u32 2, %s21
      %s246 = smul.u32 32, %s21
      %p247 = scmp.lt.s32.totalorder %s246, 31
      %s248 = scalar_select %p247, %s246, 31
      %p249 = scmp.lt.s32.totalorder %s20, 0
      %s250 = scalar_select %p249, %s20, 0
      %s251 = sadd.s32 %s250, %s248
      %s252 = smul.addr %s251, 4
      %s253 = scalar_lea.vmem %s1, %s252
      %s254 = smul.u32 32, %s21
      %p255 = scmp.lt.s32.totalorder %s20, 0
      %s256 = scalar_select %p255, %s20, 0
      %s257 = scalar_lea.vmem %s2, %s256
      %s258 = smul.u32 64, %s19
      %p259 = scmp.lt.s32.totalorder %s258, 127
      %s260 = scalar_select %p259, %s258, 127
      %p261 = scmp.lt.s32.totalorder %s20, 0
      %s262 = scalar_select %p261, %s20, 0
      %s263 = sadd.s32 %s262, %s260
      %s264 = smul.addr %s263, 4
      %s265 = scalar_lea.vmem %s3, %s264
      %s266 = smul.u32 64, %s19
      %v268 = vld [vmem:[%s243] sm:$0xff]
      %v269 = vld [vmem:[%s243 + $0x8] sm:$0xff]
      %v270 = vld [vmem:[%s243 + $0x10] sm:$0xff]
      %v271 = vld [vmem:[%s243 + $0x18] sm:$0xff]
      %v272 = vld [vmem:[%s243 + $0x20] sm:$0xff]
      %v273 = vld [vmem:[%s243 + $0x28] sm:$0xff]
      %v274 = vld [vmem:[%s243 + $0x30] sm:$0xff]
      %v275 = vld [vmem:[%s243 + $0x38] sm:$0xff]
      %v276 = vld [vmem:[%s243 + $0x40] sm:$0xff]
      %v277 = vld [vmem:[%s243 + $0x48] sm:$0xff]
      %v278 = vld [vmem:[%s243 + $0x50] sm:$0xff]
      %v279 = vld [vmem:[%s243 + $0x58] sm:$0xff]
      %v280 = vld [vmem:[%s243 + $0x60] sm:$0xff]
      %v281 = vld [vmem:[%s243 + $0x68] sm:$0xff]
      %v282 = vld [vmem:[%s243 + $0x70] sm:$0xff]
      %v283 = vld [vmem:[%s243 + $0x78] sm:$0xff]
      %v284 = vld [vmem:[%s243 + $0x80] sm:$0xff]
      %v285 = vld [vmem:[%s243 + $0x88] sm:$0xff]
      %v286 = vld [vmem:[%s243 + $0x90] sm:$0xff]
      %v287 = vld [vmem:[%s243 + $0x98] sm:$0xff]
      %v288 = vld [vmem:[%s243 + $0xa0] sm:$0xff]
      %v289 = vld [vmem:[%s243 + $0xa8] sm:$0xff]
      %v290 = vld [vmem:[%s243 + $0xb0] sm:$0xff]
      %v291 = vld [vmem:[%s243 + $0xb8] sm:$0xff]
      %v292 = vld [vmem:[%s243 + $0xc0] sm:$0xff]
      %v293 = vld [vmem:[%s243 + $0xc8] sm:$0xff]
      %v294 = vld [vmem:[%s243 + $0xd0] sm:$0xff]
      %v295 = vld [vmem:[%s243 + $0xd8] sm:$0xff]
      %v296 = vld [vmem:[%s243 + $0xe0] sm:$0xff]
      %v297 = vld [vmem:[%s243 + $0xe8] sm:$0xff]
      %v298 = vld [vmem:[%s243 + $0xf0] sm:$0xff]
      %v299 = vld [vmem:[%s243 + $0xf8] sm:$0xff]
      %v300 = vld [vmem:[%s243 + $0x100] sm:$0xff]
      %v301 = vld [vmem:[%s243 + $0x108] sm:$0xff]
      %v302 = vld [vmem:[%s243 + $0x110] sm:$0xff]
      %v303 = vld [vmem:[%s243 + $0x118] sm:$0xff]
      %v304 = vld [vmem:[%s243 + $0x120] sm:$0xff]
      %v305 = vld [vmem:[%s243 + $0x128] sm:$0xff]
      %v306 = vld [vmem:[%s243 + $0x130] sm:$0xff]
      %v307 = vld [vmem:[%s243 + $0x138] sm:$0xff]
      %v308 = vld [vmem:[%s243 + $0x140] sm:$0xff]
      %v309 = vld [vmem:[%s243 + $0x148] sm:$0xff]
      %v310 = vld [vmem:[%s243 + $0x150] sm:$0xff]
      %v311 = vld [vmem:[%s243 + $0x158] sm:$0xff]
      %v312 = vld [vmem:[%s243 + $0x160] sm:$0xff]
      %v313 = vld [vmem:[%s243 + $0x168] sm:$0xff]
      %v314 = vld [vmem:[%s243 + $0x170] sm:$0xff]
      %v315 = vld [vmem:[%s243 + $0x178] sm:$0xff]
      %v316 = vld [vmem:[%s243 + $0x180] sm:$0xff]
      %v317 = vld [vmem:[%s243 + $0x188] sm:$0xff]
      %v318 = vld [vmem:[%s243 + $0x190] sm:$0xff]
      %v319 = vld [vmem:[%s243 + $0x198] sm:$0xff]
      %v320 = vld [vmem:[%s243 + $0x1a0] sm:$0xff]
      %v321 = vld [vmem:[%s243 + $0x1a8] sm:$0xff]
      %v322 = vld [vmem:[%s243 + $0x1b0] sm:$0xff]
      %v323 = vld [vmem:[%s243 + $0x1b8] sm:$0xff]
      %v324 = vld [vmem:[%s243 + $0x1c0] sm:$0xff]
      %v325 = vld [vmem:[%s243 + $0x1c8] sm:$0xff]
      %v326 = vld [vmem:[%s243 + $0x1d0] sm:$0xff]
      %v327 = vld [vmem:[%s243 + $0x1d8] sm:$0xff]
      %v328 = vld [vmem:[%s243 + $0x1e0] sm:$0xff]
      %v329 = vld [vmem:[%s243 + $0x1e8] sm:$0xff]
      %v330 = vld [vmem:[%s243 + $0x1f0] sm:$0xff]
      %v331 = vld [vmem:[%s243 + $0x1f8] sm:$0xff]
      %v332 = vld [vmem:[%s253] sm:$0xf]
      %v333 = vld [vmem:[%s253 + $0x4] sm:$0xf]
      %v334 = vld [vmem:[%s253 + $0x8] sm:$0xf]
      %v335 = vld [vmem:[%s253 + $0xc] sm:$0xf]
      %v336 = vld [vmem:[%s253 + $0x10] sm:$0xf]
      %v337 = vld [vmem:[%s253 + $0x14] sm:$0xf]
      %v338 = vld [vmem:[%s253 + $0x18] sm:$0xf]
      %v339 = vld [vmem:[%s253 + $0x1c] sm:$0xf]
      %v340 = vld [vmem:[%s253 + $0x20] sm:$0xf]
      %v341 = vld [vmem:[%s253 + $0x24] sm:$0xf]
      %v342 = vld [vmem:[%s253 + $0x28] sm:$0xf]
      %v343 = vld [vmem:[%s253 + $0x2c] sm:$0xf]
      %v344 = vld [vmem:[%s253 + $0x30] sm:$0xf]
      %v345 = vld [vmem:[%s253 + $0x34] sm:$0xf]
      %v346 = vld [vmem:[%s253 + $0x38] sm:$0xf]
      %v347 = vld [vmem:[%s253 + $0x3c] sm:$0xf]
      %v348 = vld [vmem:[%s253 + $0x40] sm:$0xf]
      %v349 = vld [vmem:[%s253 + $0x44] sm:$0xf]
      %v350 = vld [vmem:[%s253 + $0x48] sm:$0xf]
      %v351 = vld [vmem:[%s253 + $0x4c] sm:$0xf]
      %v352 = vld [vmem:[%s253 + $0x50] sm:$0xf]
      %v353 = vld [vmem:[%s253 + $0x54] sm:$0xf]
      %v354 = vld [vmem:[%s253 + $0x58] sm:$0xf]
      %v355 = vld [vmem:[%s253 + $0x5c] sm:$0xf]
      %v356 = vld [vmem:[%s253 + $0x60] sm:$0xf]
      %v357 = vld [vmem:[%s253 + $0x64] sm:$0xf]
      %v358 = vld [vmem:[%s253 + $0x68] sm:$0xf]
      %v359 = vld [vmem:[%s253 + $0x6c] sm:$0xf]
      %v360 = vld [vmem:[%s253 + $0x70] sm:$0xf]
      %v361 = vld [vmem:[%s253 + $0x74] sm:$0xf]
      %v362 = vld [vmem:[%s253 + $0x78] sm:$0xf]
      %v363 = vld [vmem:[%s253 + $0x7c] sm:$0xf]
      %v364 = vld [vmem:[%s257] sm:$0x1]
      %v366 = vlaneseq
      %v367 = vshrl.u32 %v366, 7
      %v368 = vsub.s32 0, %v367
      %v369 = vrot.slane %v364, %v368
      %v435 = vunpack.c.l.b16 %v268
      %v436 = vunpack.c.h.b16 %v268
      %v437 = vunpack.c.l.b16 %v269
      %v438 = vunpack.c.h.b16 %v269
      %v439 = vunpack.c.l.b16 %v270
      %v440 = vunpack.c.h.b16 %v270
      %v441 = vunpack.c.l.b16 %v271
      %v442 = vunpack.c.h.b16 %v271
      %v443 = vunpack.c.l.b16 %v272
      %v444 = vunpack.c.h.b16 %v272
      %v445 = vunpack.c.l.b16 %v273
      %v446 = vunpack.c.h.b16 %v273
      %v447 = vunpack.c.l.b16 %v274
      %v448 = vunpack.c.h.b16 %v274
      %v449 = vunpack.c.l.b16 %v275
      %v450 = vunpack.c.h.b16 %v275
      %v451 = vunpack.c.l.b16 %v276
      %v452 = vunpack.c.h.b16 %v276
      %v453 = vunpack.c.l.b16 %v277
      %v454 = vunpack.c.h.b16 %v277
      %v455 = vunpack.c.l.b16 %v278
      %v456 = vunpack.c.h.b16 %v278
      %v457 = vunpack.c.l.b16 %v279
      %v458 = vunpack.c.h.b16 %v279
      %v459 = vunpack.c.l.b16 %v280
      %v460 = vunpack.c.h.b16 %v280
      %v461 = vunpack.c.l.b16 %v281
      %v462 = vunpack.c.h.b16 %v281
      %v463 = vunpack.c.l.b16 %v282
      %v464 = vunpack.c.h.b16 %v282
      %v465 = vunpack.c.l.b16 %v283
      %v466 = vunpack.c.h.b16 %v283
      %v467 = vunpack.c.l.b16 %v284
      %v468 = vunpack.c.h.b16 %v284
      %v469 = vunpack.c.l.b16 %v285
      %v470 = vunpack.c.h.b16 %v285
      %v471 = vunpack.c.l.b16 %v286
      %v472 = vunpack.c.h.b16 %v286
      %v473 = vunpack.c.l.b16 %v287
      %v474 = vunpack.c.h.b16 %v287
      %v475 = vunpack.c.l.b16 %v288
      %v476 = vunpack.c.h.b16 %v288
      %v477 = vunpack.c.l.b16 %v289
      %v478 = vunpack.c.h.b16 %v289
      %v479 = vunpack.c.l.b16 %v290
      %v480 = vunpack.c.h.b16 %v290
      %v481 = vunpack.c.l.b16 %v291
      %v482 = vunpack.c.h.b16 %v291
      %v483 = vunpack.c.l.b16 %v292
      %v484 = vunpack.c.h.b16 %v292
      %v485 = vunpack.c.l.b16 %v293
      %v486 = vunpack.c.h.b16 %v293
      %v487 = vunpack.c.l.b16 %v294
      %v488 = vunpack.c.h.b16 %v294
      %v489 = vunpack.c.l.b16 %v295
      %v490 = vunpack.c.h.b16 %v295
      %v491 = vunpack.c.l.b16 %v296
      %v492 = vunpack.c.h.b16 %v296
      %v493 = vunpack.c.l.b16 %v297
      %v494 = vunpack.c.h.b16 %v297
      %v495 = vunpack.c.l.b16 %v298
      %v496 = vunpack.c.h.b16 %v298
      %v497 = vunpack.c.l.b16 %v299
      %v498 = vunpack.c.h.b16 %v299
      %v499 = vunpack.c.l.b16 %v300
      %v500 = vunpack.c.h.b16 %v300
      %v501 = vunpack.c.l.b16 %v301
      %v502 = vunpack.c.h.b16 %v301
      %v503 = vunpack.c.l.b16 %v302
      %v504 = vunpack.c.h.b16 %v302
      %v505 = vunpack.c.l.b16 %v303
      %v506 = vunpack.c.h.b16 %v303
      %v507 = vunpack.c.l.b16 %v304
      %v508 = vunpack.c.h.b16 %v304
      %v509 = vunpack.c.l.b16 %v305
      %v510 = vunpack.c.h.b16 %v305
      %v511 = vunpack.c.l.b16 %v306
      %v512 = vunpack.c.h.b16 %v306
      %v513 = vunpack.c.l.b16 %v307
      %v514 = vunpack.c.h.b16 %v307
      %v515 = vunpack.c.l.b16 %v308
      %v516 = vunpack.c.h.b16 %v308
      %v517 = vunpack.c.l.b16 %v309
      %v518 = vunpack.c.h.b16 %v309
      %v519 = vunpack.c.l.b16 %v310
      %v520 = vunpack.c.h.b16 %v310
      %v521 = vunpack.c.l.b16 %v311
      %v522 = vunpack.c.h.b16 %v311
      %v523 = vunpack.c.l.b16 %v312
      %v524 = vunpack.c.h.b16 %v312
      %v525 = vunpack.c.l.b16 %v313
      %v526 = vunpack.c.h.b16 %v313
      %v527 = vunpack.c.l.b16 %v314
      %v528 = vunpack.c.h.b16 %v314
      %v529 = vunpack.c.l.b16 %v315
      %v530 = vunpack.c.h.b16 %v315
      %v531 = vunpack.c.l.b16 %v316
      %v532 = vunpack.c.h.b16 %v316
      %v533 = vunpack.c.l.b16 %v317
      %v534 = vunpack.c.h.b16 %v317
      %v535 = vunpack.c.l.b16 %v318
      %v536 = vunpack.c.h.b16 %v318
      %v537 = vunpack.c.l.b16 %v319
      %v538 = vunpack.c.h.b16 %v319
      %v539 = vunpack.c.l.b16 %v320
      %v540 = vunpack.c.h.b16 %v320
      %v541 = vunpack.c.l.b16 %v321
      %v542 = vunpack.c.h.b16 %v321
      %v543 = vunpack.c.l.b16 %v322
      %v544 = vunpack.c.h.b16 %v322
      %v545 = vunpack.c.l.b16 %v323
      %v546 = vunpack.c.h.b16 %v323
      %v547 = vunpack.c.l.b16 %v324
      %v548 = vunpack.c.h.b16 %v324
      %v549 = vunpack.c.l.b16 %v325
      %v550 = vunpack.c.h.b16 %v325
      %v551 = vunpack.c.l.b16 %v326
      %v552 = vunpack.c.h.b16 %v326
      %v553 = vunpack.c.l.b16 %v327
      %v554 = vunpack.c.h.b16 %v327
      %v555 = vunpack.c.l.b16 %v328
      %v556 = vunpack.c.h.b16 %v328
      %v557 = vunpack.c.l.b16 %v329
      %v558 = vunpack.c.h.b16 %v329
      %v559 = vunpack.c.l.b16 %v330
      %v560 = vunpack.c.h.b16 %v330
      %v561 = vunpack.c.l.b16 %v331
      %v562 = vunpack.c.h.b16 %v331
      %v563 = vpack.c.b16 %v437, %v435
      %v564 = vpack.c.b16 %v438, %v436
      %v565 = vpack.c.b16 %v441, %v439
      %v566 = vpack.c.b16 %v442, %v440
      %v567 = vpack.c.b16 %v445, %v443
      %v568 = vpack.c.b16 %v446, %v444
      %v569 = vpack.c.b16 %v449, %v447
      %v570 = vpack.c.b16 %v450, %v448
      %v571 = vpack.c.b16 %v453, %v451
      %v572 = vpack.c.b16 %v454, %v452
      %v573 = vpack.c.b16 %v457, %v455
      %v574 = vpack.c.b16 %v458, %v456
      %v575 = vpack.c.b16 %v461, %v459
      %v576 = vpack.c.b16 %v462, %v460
      %v577 = vpack.c.b16 %v465, %v463
      %v578 = vpack.c.b16 %v466, %v464
      %v579 = vpack.c.b16 %v469, %v467
      %v580 = vpack.c.b16 %v470, %v468
      %v581 = vpack.c.b16 %v473, %v471
      %v582 = vpack.c.b16 %v474, %v472
      %v583 = vpack.c.b16 %v477, %v475
      %v584 = vpack.c.b16 %v478, %v476
      %v585 = vpack.c.b16 %v481, %v479
      %v586 = vpack.c.b16 %v482, %v480
      %v587 = vpack.c.b16 %v485, %v483
      %v588 = vpack.c.b16 %v486, %v484
      %v589 = vpack.c.b16 %v489, %v487
      %v590 = vpack.c.b16 %v490, %v488
      %v591 = vpack.c.b16 %v493, %v491
      %v592 = vpack.c.b16 %v494, %v492
      %v593 = vpack.c.b16 %v497, %v495
      %v594 = vpack.c.b16 %v498, %v496
      %v595 = vpack.c.b16 %v501, %v499
      %v596 = vpack.c.b16 %v502, %v500
      %v597 = vpack.c.b16 %v505, %v503
      %v598 = vpack.c.b16 %v506, %v504
      %v599 = vpack.c.b16 %v509, %v507
      %v600 = vpack.c.b16 %v510, %v508
      %v601 = vpack.c.b16 %v513, %v511
      %v602 = vpack.c.b16 %v514, %v512
      %v603 = vpack.c.b16 %v517, %v515
      %v604 = vpack.c.b16 %v518, %v516
      %v605 = vpack.c.b16 %v521, %v519
      %v606 = vpack.c.b16 %v522, %v520
      %v607 = vpack.c.b16 %v525, %v523
      %v608 = vpack.c.b16 %v526, %v524
      %v609 = vpack.c.b16 %v529, %v527
      %v610 = vpack.c.b16 %v530, %v528
      %v611 = vpack.c.b16 %v533, %v531
      %v612 = vpack.c.b16 %v534, %v532
      %v613 = vpack.c.b16 %v537, %v535
      %v614 = vpack.c.b16 %v538, %v536
      %v615 = vpack.c.b16 %v541, %v539
      %v616 = vpack.c.b16 %v542, %v540
      %v617 = vpack.c.b16 %v545, %v543
      %v618 = vpack.c.b16 %v546, %v544
      %v619 = vpack.c.b16 %v549, %v547
      %v620 = vpack.c.b16 %v550, %v548
      %v621 = vpack.c.b16 %v553, %v551
      %v622 = vpack.c.b16 %v554, %v552
      %v623 = vpack.c.b16 %v557, %v555
      %v624 = vpack.c.b16 %v558, %v556
      %v625 = vpack.c.b16 %v561, %v559
      %v626 = vpack.c.b16 %v562, %v560
      %v723 = vunpack.c.l.b16 %v332
      %v724 = vunpack.c.l.b16 %v333
      %v725 = vunpack.c.l.b16 %v334
      %v726 = vunpack.c.l.b16 %v335
      %v727 = vunpack.c.l.b16 %v336
      %v728 = vunpack.c.l.b16 %v337
      %v729 = vunpack.c.l.b16 %v338
      %v730 = vunpack.c.l.b16 %v339
      %v731 = vunpack.c.l.b16 %v340
      %v732 = vunpack.c.l.b16 %v341
      %v733 = vunpack.c.l.b16 %v342
      %v734 = vunpack.c.l.b16 %v343
      %v735 = vunpack.c.l.b16 %v344
      %v736 = vunpack.c.l.b16 %v345
      %v737 = vunpack.c.l.b16 %v346
      %v738 = vunpack.c.l.b16 %v347
      %v739 = vunpack.c.l.b16 %v348
      %v740 = vunpack.c.l.b16 %v349
      %v741 = vunpack.c.l.b16 %v350
      %v742 = vunpack.c.l.b16 %v351
      %v743 = vunpack.c.l.b16 %v352
      %v744 = vunpack.c.l.b16 %v353
      %v745 = vunpack.c.l.b16 %v354
      %v746 = vunpack.c.l.b16 %v355
      %v747 = vunpack.c.l.b16 %v356
      %v748 = vunpack.c.l.b16 %v357
      %v749 = vunpack.c.l.b16 %v358
      %v750 = vunpack.c.l.b16 %v359
      %v751 = vunpack.c.l.b16 %v360
      %v752 = vunpack.c.l.b16 %v361
      %v753 = vunpack.c.l.b16 %v362
      %v754 = vunpack.c.l.b16 %v363
      %v755 = vpack.c.b16 %v724, %v723
      %v756 = vpack.c.b16 %v726, %v725
      %v757 = vpack.c.b16 %v728, %v727
      %v758 = vpack.c.b16 %v730, %v729
      %v759 = vpack.c.b16 %v732, %v731
      %v760 = vpack.c.b16 %v734, %v733
      %v761 = vpack.c.b16 %v736, %v735
      %v762 = vpack.c.b16 %v738, %v737
      %v763 = vpack.c.b16 %v740, %v739
      %v764 = vpack.c.b16 %v742, %v741
      %v765 = vpack.c.b16 %v744, %v743
      %v766 = vpack.c.b16 %v746, %v745
      %v767 = vpack.c.b16 %v748, %v747
      %v768 = vpack.c.b16 %v750, %v749
      %v769 = vpack.c.b16 %v752, %v751
      %v770 = vpack.c.b16 %v754, %v753
      %787 = vmatprep.subr.bf16.mxu0 0
      %788 = vmatpush1.bf16.msra.mxu0 %v755
      %789 = vmatprep.subr.bf16.mxu0 0
      %790 = vmatpush1.bf16.msra.mxu0 %v756
      %791 = vmatprep.subr.bf16.mxu0 0
      %792 = vmatpush1.bf16.msra.mxu0 %v757
      %793 = vmatprep.subr.bf16.mxu0 0
      %794 = vmatpush1.bf16.msra.mxu0 %v758
      %795 = vmatprep.subr.bf16.mxu0 0
      %796 = vmatpush1.bf16.msra.mxu0 %v759
      %797 = vmatprep.subr.bf16.mxu0 0
      %798 = vmatpush1.bf16.msra.mxu0 %v760
      %799 = vmatprep.subr.bf16.mxu0 0
      %800 = vmatpush1.bf16.msra.mxu0 %v761
      %801 = vmatprep.subr.bf16.mxu0 0
      %802 = vmatpush1.bf16.msra.mxu0 %v762
      %803 = vmatprep.subr.bf16.mxu0 0
      %804 = vmatpush1.bf16.msra.mxu0 %v763
      %805 = vmatprep.subr.bf16.mxu0 0
      %806 = vmatpush1.bf16.msra.mxu0 %v764
      %807 = vmatprep.subr.bf16.mxu0 0
      %808 = vmatpush1.bf16.msra.mxu0 %v765
      %809 = vmatprep.subr.bf16.mxu0 0
      %810 = vmatpush1.bf16.msra.mxu0 %v766
      %811 = vmatprep.subr.bf16.mxu0 0
      %812 = vmatpush1.bf16.msra.mxu0 %v767
      %813 = vmatprep.subr.bf16.mxu0 0
      %814 = vmatpush1.bf16.msra.mxu0 %v768
      %815 = vmatprep.subr.bf16.mxu0 0
      %816 = vmatpush1.bf16.msra.mxu0 %v769
      %817 = vmatprep.subr.bf16.mxu0 0
      %818 = vmatpush1.bf16.msra.mxu0 %v770
      %819 = vmatprep.mubr.bf16.mxu0 %v564
      %820 = vmatmul.mubr.bf16.gmra.mrb[0].mxu0 %v563
      %v821 = vpop.f32.mrb[0].mxu0
      %v822 = vadd.f32 %v369, %v821
      %v823 = vpop.f32.mrb[0].mxu0
      %v824 = vpop.f32.mrb[0].mxu0
      %v825 = vadd.f32 %v369, %v824
      %v826 = vpop.f32.mrb[0].mxu0
      %827 = vmatprep.mubr.bf16.mxu0 %v566
      %828 = vmatmul.mubr.bf16.gmra.mrb[0].mxu0 %v565
      %v829 = vpop.f32.mrb[0].mxu0
      %v830 = vadd.f32 %v369, %v829
      %v831 = vpop.f32.mrb[0].mxu0
      %v832 = vpop.f32.mrb[0].mxu0
      %v833 = vadd.f32 %v369, %v832
      %v834 = vpop.f32.mrb[0].mxu0
      %835 = vmatprep.mubr.bf16.mxu0 %v568
      %836 = vmatmul.mubr.bf16.gmra.mrb[0].mxu0 %v567
      %v837 = vpop.f32.mrb[0].mxu0
      %v838 = vadd.f32 %v369, %v837
      %v839 = vpop.f32.mrb[0].mxu0
      %v840 = vpop.f32.mrb[0].mxu0
      %v841 = vadd.f32 %v369, %v840
      %v842 = vpop.f32.mrb[0].mxu0
      %843 = vmatprep.mubr.bf16.mxu0 %v570
      %844 = vmatmul.mubr.bf16.gmra.mrb[0].mxu0 %v569
      %v845 = vpop.f32.mrb[0].mxu0
      %v846 = vadd.f32 %v369, %v845
      %v847 = vpop.f32.mrb[0].mxu0
      %v848 = vpop.f32.mrb[0].mxu0
      %v849 = vadd.f32 %v369, %v848
      %v850 = vpop.f32.mrb[0].mxu0
      %851 = vmatprep.mubr.bf16.mxu0 %v572
      %852 = vmatmul.mubr.bf16.gmra.mrb[0].mxu0 %v571
      %v853 = vpop.f32.mrb[0].mxu0
      %v854 = vadd.f32 %v369, %v853
      %v855 = vpop.f32.mrb[0].mxu0
      %v856 = vpop.f32.mrb[0].mxu0
      %v857 = vadd.f32 %v369, %v856
      %v858 = vpop.f32.mrb[0].mxu0
      %859 = vmatprep.mubr.bf16.mxu0 %v574
      %860 = vmatmul.mubr.bf16.gmra.mrb[0].mxu0 %v573
      %v861 = vpop.f32.mrb[0].mxu0
      %v862 = vadd.f32 %v369, %v861
      %v863 = vpop.f32.mrb[0].mxu0
      %v864 = vpop.f32.mrb[0].mxu0
      %v865 = vadd.f32 %v369, %v864
      %v866 = vpop.f32.mrb[0].mxu0
      %867 = vmatprep.mubr.bf16.mxu0 %v576
      %868 = vmatmul.mubr.bf16.gmra.mrb[0].mxu0 %v575
      %v869 = vpop.f32.mrb[0].mxu0
      %v870 = vadd.f32 %v369, %v869
      %v871 = vpop.f32.mrb[0].mxu0
      %v872 = vpop.f32.mrb[0].mxu0
      %v873 = vadd.f32 %v369, %v872
      %v874 = vpop.f32.mrb[0].mxu0
      %875 = vmatprep.mubr.bf16.mxu0 %v578
      %876 = vmatmul.mubr.bf16.gmra.mrb[0].mxu0 %v577
      %v877 = vpop.f32.mrb[0].mxu0
      %v878 = vadd.f32 %v369, %v877
      %v879 = vpop.f32.mrb[0].mxu0
      %v880 = vpop.f32.mrb[0].mxu0
      %v881 = vadd.f32 %v369, %v880
      %v882 = vpop.f32.mrb[0].mxu0
      %883 = vmatprep.mubr.bf16.mxu0 %v580
      %884 = vmatmul.mubr.bf16.gmra.mrb[0].mxu0 %v579
      %v885 = vpop.f32.mrb[0].mxu0
      %v886 = vadd.f32 %v369, %v885
      %v887 = vpop.f32.mrb[0].mxu0
      %v888 = vpop.f32.mrb[0].mxu0
      %v889 = vadd.f32 %v369, %v888
      %v890 = vpop.f32.mrb[0].mxu0
      %891 = vmatprep.mubr.bf16.mxu0 %v582
      %892 = vmatmul.mubr.bf16.gmra.mrb[0].mxu0 %v581
      %v893 = vpop.f32.mrb[0].mxu0
      %v894 = vadd.f32 %v369, %v893
      %v895 = vpop.f32.mrb[0].mxu0
      %v896 = vpop.f32.mrb[0].mxu0
      %v897 = vadd.f32 %v369, %v896
      %v898 = vpop.f32.mrb[0].mxu0
      %899 = vmatprep.mubr.bf16.mxu0 %v584
      %900 = vmatmul.mubr.bf16.gmra.mrb[0].mxu0 %v583
      %v901 = vpop.f32.mrb[0].mxu0
      %v902 = vadd.f32 %v369, %v901
      %v903 = vpop.f32.mrb[0].mxu0
      %v904 = vpop.f32.mrb[0].mxu0
      %v905 = vadd.f32 %v369, %v904
      %v906 = vpop.f32.mrb[0].mxu0
      %907 = vmatprep.mubr.bf16.mxu0 %v586
      %908 = vmatmul.mubr.bf16.gmra.mrb[0].mxu0 %v585
      %v909 = vpop.f32.mrb[0].mxu0
      %v910 = vadd.f32 %v369, %v909
      %v911 = vpop.f32.mrb[0].mxu0
      %v912 = vpop.f32.mrb[0].mxu0
      %v913 = vadd.f32 %v369, %v912
      %v914 = vpop.f32.mrb[0].mxu0
      %915 = vmatprep.mubr.bf16.mxu0 %v588
      %916 = vmatmul.mubr.bf16.gmra.mrb[0].mxu0 %v587
      %v917 = vpop.f32.mrb[0].mxu0
      %v918 = vadd.f32 %v369, %v917
      %v919 = vpop.f32.mrb[0].mxu0
      %v920 = vpop.f32.mrb[0].mxu0
      %v921 = vadd.f32 %v369, %v920
      %v922 = vpop.f32.mrb[0].mxu0
      %923 = vmatprep.mubr.bf16.mxu0 %v590
      %924 = vmatmul.mubr.bf16.gmra.mrb[0].mxu0 %v589
      %v925 = vpop.f32.mrb[0].mxu0
      %v926 = vadd.f32 %v369, %v925
      %v927 = vpop.f32.mrb[0].mxu0
      %v928 = vpop.f32.mrb[0].mxu0
      %v929 = vadd.f32 %v369, %v928
      %v930 = vpop.f32.mrb[0].mxu0
      %931 = vmatprep.mubr.bf16.mxu0 %v592
      %932 = vmatmul.mubr.bf16.gmra.mrb[0].mxu0 %v591
      %v933 = vpop.f32.mrb[0].mxu0
      %v934 = vadd.f32 %v369, %v933
      %v935 = vpop.f32.mrb[0].mxu0
      %v936 = vpop.f32.mrb[0].mxu0
      %v937 = vadd.f32 %v369, %v936
      %v938 = vpop.f32.mrb[0].mxu0
      %939 = vmatprep.mubr.bf16.mxu0 %v594
      %940 = vmatmul.mubr.bf16.gmra.mrb[0].mxu0 %v593
      %v941 = vpop.f32.mrb[0].mxu0
      %v942 = vadd.f32 %v369, %v941
      %v943 = vpop.f32.mrb[0].mxu0
      %v944 = vpop.f32.mrb[0].mxu0
      %v945 = vadd.f32 %v369, %v944
      %v946 = vpop.f32.mrb[0].mxu0
      %947 = vmatprep.mubr.bf16.mxu0 %v596
      %948 = vmatmul.mubr.bf16.gmra.mrb[0].mxu0 %v595
      %v949 = vpop.f32.mrb[0].mxu0
      %v950 = vadd.f32 %v369, %v949
      %v951 = vpop.f32.mrb[0].mxu0
      %v952 = vpop.f32.mrb[0].mxu0
      %v953 = vadd.f32 %v369, %v952
      %v954 = vpop.f32.mrb[0].mxu0
      %955 = vmatprep.mubr.bf16.mxu0 %v598
      %956 = vmatmul.mubr.bf16.gmra.mrb[0].mxu0 %v597
      %v957 = vpop.f32.mrb[0].mxu0
      %v958 = vadd.f32 %v369, %v957
      %v959 = vpop.f32.mrb[0].mxu0
      %v960 = vpop.f32.mrb[0].mxu0
      %v961 = vadd.f32 %v369, %v960
      %v962 = vpop.f32.mrb[0].mxu0
      %963 = vmatprep.mubr.bf16.mxu0 %v600
      %964 = vmatmul.mubr.bf16.gmra.mrb[0].mxu0 %v599
      %v965 = vpop.f32.mrb[0].mxu0
      %v966 = vadd.f32 %v369, %v965
      %v967 = vpop.f32.mrb[0].mxu0
      %v968 = vpop.f32.mrb[0].mxu0
      %v969 = vadd.f32 %v369, %v968
      %v970 = vpop.f32.mrb[0].mxu0
      %971 = vmatprep.mubr.bf16.mxu0 %v602
      %972 = vmatmul.mubr.bf16.gmra.mrb[0].mxu0 %v601
      %v973 = vpop.f32.mrb[0].mxu0
      %v974 = vadd.f32 %v369, %v973
      %v975 = vpop.f32.mrb[0].mxu0
      %v976 = vpop.f32.mrb[0].mxu0
      %v977 = vadd.f32 %v369, %v976
      %v978 = vpop.f32.mrb[0].mxu0
      %979 = vmatprep.mubr.bf16.mxu0 %v604
      %980 = vmatmul.mubr.bf16.gmra.mrb[0].mxu0 %v603
      %v981 = vpop.f32.mrb[0].mxu0
      %v982 = vadd.f32 %v369, %v981
      %v983 = vpop.f32.mrb[0].mxu0
      %v984 = vpop.f32.mrb[0].mxu0
      %v985 = vadd.f32 %v369, %v984
      %v986 = vpop.f32.mrb[0].mxu0
      %987 = vmatprep.mubr.bf16.mxu0 %v606
      %988 = vmatmul.mubr.bf16.gmra.mrb[0].mxu0 %v605
      %v989 = vpop.f32.mrb[0].mxu0
      %v990 = vadd.f32 %v369, %v989
      %v991 = vpop.f32.mrb[0].mxu0
      %v992 = vpop.f32.mrb[0].mxu0
      %v993 = vadd.f32 %v369, %v992
      %v994 = vpop.f32.mrb[0].mxu0
      %995 = vmatprep.mubr.bf16.mxu0 %v608
      %996 = vmatmul.mubr.bf16.gmra.mrb[0].mxu0 %v607
      %v997 = vpop.f32.mrb[0].mxu0
      %v998 = vadd.f32 %v369, %v997
      %v999 = vpop.f32.mrb[0].mxu0
      %v1000 = vpop.f32.mrb[0].mxu0
      %v1001 = vadd.f32 %v369, %v1000
      %v1002 = vpop.f32.mrb[0].mxu0
      %1003 = vmatprep.mubr.bf16.mxu0 %v610
      %1004 = vmatmul.mubr.bf16.gmra.mrb[0].mxu0 %v609
      %v1005 = vpop.f32.mrb[0].mxu0
      %v1006 = vadd.f32 %v369, %v1005
      %v1007 = vpop.f32.mrb[0].mxu0
      %v1008 = vpop.f32.mrb[0].mxu0
      %v1009 = vadd.f32 %v369, %v1008
      %v1010 = vpop.f32.mrb[0].mxu0
      %1011 = vmatprep.mubr.bf16.mxu0 %v612
      %1012 = vmatmul.mubr.bf16.gmra.mrb[0].mxu0 %v611
      %v1013 = vpop.f32.mrb[0].mxu0
      %v1014 = vadd.f32 %v369, %v1013
      %v1015 = vpop.f32.mrb[0].mxu0
      %v1016 = vpop.f32.mrb[0].mxu0
      %v1017 = vadd.f32 %v369, %v1016
      %v1018 = vpop.f32.mrb[0].mxu0
      %1019 = vmatprep.mubr.bf16.mxu0 %v614
      %1020 = vmatmul.mubr.bf16.gmra.mrb[0].mxu0 %v613
      %v1021 = vpop.f32.mrb[0].mxu0
      %v1022 = vadd.f32 %v369, %v1021
      %v1023 = vpop.f32.mrb[0].mxu0
      %v1024 = vpop.f32.mrb[0].mxu0
      %v1025 = vadd.f32 %v369, %v1024
      %v1026 = vpop.f32.mrb[0].mxu0
      %1027 = vmatprep.mubr.bf16.mxu0 %v616
      %1028 = vmatmul.mubr.bf16.gmra.mrb[0].mxu0 %v615
      %v1029 = vpop.f32.mrb[0].mxu0
      %v1030 = vadd.f32 %v369, %v1029
      %v1031 = vpop.f32.mrb[0].mxu0
      %v1032 = vpop.f32.mrb[0].mxu0
      %v1033 = vadd.f32 %v369, %v1032
      %v1034 = vpop.f32.mrb[0].mxu0
      %1035 = vmatprep.mubr.bf16.mxu0 %v618
      %1036 = vmatmul.mubr.bf16.gmra.mrb[0].mxu0 %v617
      %v1037 = vpop.f32.mrb[0].mxu0
      %v1038 = vadd.f32 %v369, %v1037
      %v1039 = vpop.f32.mrb[0].mxu0
      %v1040 = vpop.f32.mrb[0].mxu0
      %v1041 = vadd.f32 %v369, %v1040
      %v1042 = vpop.f32.mrb[0].mxu0
      %1043 = vmatprep.mubr.bf16.mxu0 %v620
      %1044 = vmatmul.mubr.bf16.gmra.mrb[0].mxu0 %v619
      %v1045 = vpop.f32.mrb[0].mxu0
      %v1046 = vadd.f32 %v369, %v1045
      %v1047 = vpop.f32.mrb[0].mxu0
      %v1048 = vpop.f32.mrb[0].mxu0
      %v1049 = vadd.f32 %v369, %v1048
      %v1050 = vpop.f32.mrb[0].mxu0
      %1051 = vmatprep.mubr.bf16.mxu0 %v622
      %1052 = vmatmul.mubr.bf16.gmra.mrb[0].mxu0 %v621
      %v1053 = vpop.f32.mrb[0].mxu0
      %v1054 = vadd.f32 %v369, %v1053
      %v1055 = vpop.f32.mrb[0].mxu0
      %v1056 = vpop.f32.mrb[0].mxu0
      %v1057 = vadd.f32 %v369, %v1056
      %v1058 = vpop.f32.mrb[0].mxu0
      %1059 = vmatprep.mubr.bf16.mxu0 %v624
      %1060 = vmatmul.mubr.bf16.gmra.mrb[0].mxu0 %v623
      %v1061 = vpop.f32.mrb[0].mxu0
      %v1062 = vadd.f32 %v369, %v1061
      %v1063 = vpop.f32.mrb[0].mxu0
      %v1064 = vpop.f32.mrb[0].mxu0
      %v1065 = vadd.f32 %v369, %v1064
      %v1066 = vpop.f32.mrb[0].mxu0
      %1067 = vmatprep.mubr.bf16.mxu0 %v626
      %1068 = vmatmul.mubr.bf16.gmra.mrb[0].mxu0 %v625
      %v1069 = vpop.f32.mrb[0].mxu0
      %v1070 = vadd.f32 %v369, %v1069
      %v1071 = vpop.f32.mrb[0].mxu0
      %v1072 = vpop.f32.mrb[0].mxu0
      %v1073 = vadd.f32 %v369, %v1072
      %v1074 = vpop.f32.mrb[0].mxu0
      %1075 = vdwg.mxu0
      %v1076 = vmax.f32 %v822, 0.0
      %v1077 = vmax.f32 %v825, 0.0
      %v1078 = vmax.f32 %v830, 0.0
      %v1079 = vmax.f32 %v833, 0.0
      %v1080 = vmax.f32 %v838, 0.0
      %v1081 = vmax.f32 %v841, 0.0
      %v1082 = vmax.f32 %v846, 0.0
      %v1083 = vmax.f32 %v849, 0.0
      %v1084 = vmax.f32 %v854, 0.0
      %v1085 = vmax.f32 %v857, 0.0
      %v1086 = vmax.f32 %v862, 0.0
      %v1087 = vmax.f32 %v865, 0.0
      %v1088 = vmax.f32 %v870, 0.0
      %v1089 = vmax.f32 %v873, 0.0
      %v1090 = vmax.f32 %v878, 0.0
      %v1091 = vmax.f32 %v881, 0.0
      %v1092 = vmax.f32 %v886, 0.0
      %v1093 = vmax.f32 %v889, 0.0
      %v1094 = vmax.f32 %v894, 0.0
      %v1095 = vmax.f32 %v897, 0.0
      %v1096 = vmax.f32 %v902, 0.0
      %v1097 = vmax.f32 %v905, 0.0
      %v1098 = vmax.f32 %v910, 0.0
      %v1099 = vmax.f32 %v913, 0.0
      %v1100 = vmax.f32 %v918, 0.0
      %v1101 = vmax.f32 %v921, 0.0
      %v1102 = vmax.f32 %v926, 0.0
      %v1103 = vmax.f32 %v929, 0.0
      %v1104 = vmax.f32 %v934, 0.0
      %v1105 = vmax.f32 %v937, 0.0
      %v1106 = vmax.f32 %v942, 0.0
      %v1107 = vmax.f32 %v945, 0.0
      %v1108 = vmax.f32 %v950, 0.0
      %v1109 = vmax.f32 %v953, 0.0
      %v1110 = vmax.f32 %v958, 0.0
      %v1111 = vmax.f32 %v961, 0.0
      %v1112 = vmax.f32 %v966, 0.0
      %v1113 = vmax.f32 %v969, 0.0
      %v1114 = vmax.f32 %v974, 0.0
      %v1115 = vmax.f32 %v977, 0.0
      %v1116 = vmax.f32 %v982, 0.0
      %v1117 = vmax.f32 %v985, 0.0
      %v1118 = vmax.f32 %v990, 0.0
      %v1119 = vmax.f32 %v993, 0.0
      %v1120 = vmax.f32 %v998, 0.0
      %v1121 = vmax.f32 %v1001, 0.0
      %v1122 = vmax.f32 %v1006, 0.0
      %v1123 = vmax.f32 %v1009, 0.0
      %v1124 = vmax.f32 %v1014, 0.0
      %v1125 = vmax.f32 %v1017, 0.0
      %v1126 = vmax.f32 %v1022, 0.0
      %v1127 = vmax.f32 %v1025, 0.0
      %v1128 = vmax.f32 %v1030, 0.0
      %v1129 = vmax.f32 %v1033, 0.0
      %v1130 = vmax.f32 %v1038, 0.0
      %v1131 = vmax.f32 %v1041, 0.0
      %v1132 = vmax.f32 %v1046, 0.0
      %v1133 = vmax.f32 %v1049, 0.0
      %v1134 = vmax.f32 %v1054, 0.0
      %v1135 = vmax.f32 %v1057, 0.0
      %v1136 = vmax.f32 %v1062, 0.0
      %v1137 = vmax.f32 %v1065, 0.0
      %v1138 = vmax.f32 %v1070, 0.0
      %v1139 = vmax.f32 %v1073, 0.0
      %v1140 = vpack.c.bf16 %v1077, %v1076
      %v1141 = vpack.c.bf16 %v1079, %v1078
      %v1142 = vpack.c.bf16 %v1081, %v1080
      %v1143 = vpack.c.bf16 %v1083, %v1082
      %v1144 = vpack.c.bf16 %v1085, %v1084
      %v1145 = vpack.c.bf16 %v1087, %v1086
      %v1146 = vpack.c.bf16 %v1089, %v1088
      %v1147 = vpack.c.bf16 %v1091, %v1090
      %v1148 = vpack.c.bf16 %v1093, %v1092
      %v1149 = vpack.c.bf16 %v1095, %v1094
      %v1150 = vpack.c.bf16 %v1097, %v1096
      %v1151 = vpack.c.bf16 %v1099, %v1098
      %v1152 = vpack.c.bf16 %v1101, %v1100
      %v1153 = vpack.c.bf16 %v1103, %v1102
      %v1154 = vpack.c.bf16 %v1105, %v1104
      %v1155 = vpack.c.bf16 %v1107, %v1106
      %v1156 = vpack.c.bf16 %v1109, %v1108
      %v1157 = vpack.c.bf16 %v1111, %v1110
      %v1158 = vpack.c.bf16 %v1113, %v1112
      %v1159 = vpack.c.bf16 %v1115, %v1114
      %v1160 = vpack.c.bf16 %v1117, %v1116
      %v1161 = vpack.c.bf16 %v1119, %v1118
      %v1162 = vpack.c.bf16 %v1121, %v1120
      %v1163 = vpack.c.bf16 %v1123, %v1122
      %v1164 = vpack.c.bf16 %v1125, %v1124
      %v1165 = vpack.c.bf16 %v1127, %v1126
      %v1166 = vpack.c.bf16 %v1129, %v1128
      %v1167 = vpack.c.bf16 %v1131, %v1130
      %v1168 = vpack.c.bf16 %v1133, %v1132
      %v1169 = vpack.c.bf16 %v1135, %v1134
      %v1170 = vpack.c.bf16 %v1137, %v1136
      %v1171 = vpack.c.bf16 %v1139, %v1138
      %v1204 = vunpack.c.l.b16 %v1140
      %v1205 = vunpack.c.h.b16 %v1140
      %v1206 = vunpack.c.l.b16 %v1141
      %v1207 = vunpack.c.h.b16 %v1141
      %v1208 = vunpack.c.l.b16 %v1142
      %v1209 = vunpack.c.h.b16 %v1142
      %v1210 = vunpack.c.l.b16 %v1143
      %v1211 = vunpack.c.h.b16 %v1143
      %v1212 = vunpack.c.l.b16 %v1144
      %v1213 = vunpack.c.h.b16 %v1144
      %v1214 = vunpack.c.l.b16 %v1145
      %v1215 = vunpack.c.h.b16 %v1145
      %v1216 = vunpack.c.l.b16 %v1146
      %v1217 = vunpack.c.h.b16 %v1146
      %v1218 = vunpack.c.l.b16 %v1147
      %v1219 = vunpack.c.h.b16 %v1147
      %v1220 = vunpack.c.l.b16 %v1148
      %v1221 = vunpack.c.h.b16 %v1148
      %v1222 = vunpack.c.l.b16 %v1149
      %v1223 = vunpack.c.h.b16 %v1149
      %v1224 = vunpack.c.l.b16 %v1150
      %v1225 = vunpack.c.h.b16 %v1150
      %v1226 = vunpack.c.l.b16 %v1151
      %v1227 = vunpack.c.h.b16 %v1151
      %v1228 = vunpack.c.l.b16 %v1152
      %v1229 = vunpack.c.h.b16 %v1152
      %v1230 = vunpack.c.l.b16 %v1153
      %v1231 = vunpack.c.h.b16 %v1153
      %v1232 = vunpack.c.l.b16 %v1154
      %v1233 = vunpack.c.h.b16 %v1154
      %v1234 = vunpack.c.l.b16 %v1155
      %v1235 = vunpack.c.h.b16 %v1155
      %v1236 = vunpack.c.l.b16 %v1156
      %v1237 = vunpack.c.h.b16 %v1156
      %v1238 = vunpack.c.l.b16 %v1157
      %v1239 = vunpack.c.h.b16 %v1157
      %v1240 = vunpack.c.l.b16 %v1158
      %v1241 = vunpack.c.h.b16 %v1158
      %v1242 = vunpack.c.l.b16 %v1159
      %v1243 = vunpack.c.h.b16 %v1159
      %v1244 = vunpack.c.l.b16 %v1160
      %v1245 = vunpack.c.h.b16 %v1160
      %v1246 = vunpack.c.l.b16 %v1161
      %v1247 = vunpack.c.h.b16 %v1161
      %v1248 = vunpack.c.l.b16 %v1162
      %v1249 = vunpack.c.h.b16 %v1162
      %v1250 = vunpack.c.l.b16 %v1163
      %v1251 = vunpack.c.h.b16 %v1163
      %v1252 = vunpack.c.l.b16 %v1164
      %v1253 = vunpack.c.h.b16 %v1164
      %v1254 = vunpack.c.l.b16 %v1165
      %v1255 = vunpack.c.h.b16 %v1165
      %v1256 = vunpack.c.l.b16 %v1166
      %v1257 = vunpack.c.h.b16 %v1166
      %v1258 = vunpack.c.l.b16 %v1167
      %v1259 = vunpack.c.h.b16 %v1167
      %v1260 = vunpack.c.l.b16 %v1168
      %v1261 = vunpack.c.h.b16 %v1168
      %v1262 = vunpack.c.l.b16 %v1169
      %v1263 = vunpack.c.h.b16 %v1169
      %v1264 = vunpack.c.l.b16 %v1170
      %v1265 = vunpack.c.h.b16 %v1170
      %v1266 = vunpack.c.l.b16 %v1171
      %v1267 = vunpack.c.h.b16 %v1171
      %v1268 = vpack.c.b16 %v1204, %v1204
      %v1269 = vpack.c.b16 %v1205, %v1205
      %v1270 = vpack.c.b16 %v1206, %v1206
      %v1271 = vpack.c.b16 %v1207, %v1207
      %v1272 = vpack.c.b16 %v1208, %v1208
      %v1273 = vpack.c.b16 %v1209, %v1209
      %v1274 = vpack.c.b16 %v1210, %v1210
      %v1275 = vpack.c.b16 %v1211, %v1211
      %v1276 = vpack.c.b16 %v1212, %v1212
      %v1277 = vpack.c.b16 %v1213, %v1213
      %v1278 = vpack.c.b16 %v1214, %v1214
      %v1279 = vpack.c.b16 %v1215, %v1215
      %v1280 = vpack.c.b16 %v1216, %v1216
      %v1281 = vpack.c.b16 %v1217, %v1217
      %v1282 = vpack.c.b16 %v1218, %v1218
      %v1283 = vpack.c.b16 %v1219, %v1219
      %v1284 = vpack.c.b16 %v1220, %v1220
      %v1285 = vpack.c.b16 %v1221, %v1221
      %v1286 = vpack.c.b16 %v1222, %v1222
      %v1287 = vpack.c.b16 %v1223, %v1223
      %v1288 = vpack.c.b16 %v1224, %v1224
      %v1289 = vpack.c.b16 %v1225, %v1225
      %v1290 = vpack.c.b16 %v1226, %v1226
      %v1291 = vpack.c.b16 %v1227, %v1227
      %v1292 = vpack.c.b16 %v1228, %v1228
      %v1293 = vpack.c.b16 %v1229, %v1229
      %v1294 = vpack.c.b16 %v1230, %v1230
      %v1295 = vpack.c.b16 %v1231, %v1231
      %v1296 = vpack.c.b16 %v1232, %v1232
      %v1297 = vpack.c.b16 %v1233, %v1233
      %v1298 = vpack.c.b16 %v1234, %v1234
      %v1299 = vpack.c.b16 %v1235, %v1235
      %v1300 = vpack.c.b16 %v1236, %v1236
      %v1301 = vpack.c.b16 %v1237, %v1237
      %v1302 = vpack.c.b16 %v1238, %v1238
      %v1303 = vpack.c.b16 %v1239, %v1239
      %v1304 = vpack.c.b16 %v1240, %v1240
      %v1305 = vpack.c.b16 %v1241, %v1241
      %v1306 = vpack.c.b16 %v1242, %v1242
      %v1307 = vpack.c.b16 %v1243, %v1243
      %v1308 = vpack.c.b16 %v1244, %v1244
      %v1309 = vpack.c.b16 %v1245, %v1245
      %v1310 = vpack.c.b16 %v1246, %v1246
      %v1311 = vpack.c.b16 %v1247, %v1247
      %v1312 = vpack.c.b16 %v1248, %v1248
      %v1313 = vpack.c.b16 %v1249, %v1249
      %v1314 = vpack.c.b16 %v1250, %v1250
      %v1315 = vpack.c.b16 %v1251, %v1251
      %v1316 = vpack.c.b16 %v1252, %v1252
      %v1317 = vpack.c.b16 %v1253, %v1253
      %v1318 = vpack.c.b16 %v1254, %v1254
      %v1319 = vpack.c.b16 %v1255, %v1255
      %v1320 = vpack.c.b16 %v1256, %v1256
      %v1321 = vpack.c.b16 %v1257, %v1257
      %v1322 = vpack.c.b16 %v1258, %v1258
      %v1323 = vpack.c.b16 %v1259, %v1259
      %v1324 = vpack.c.b16 %v1260, %v1260
      %v1325 = vpack.c.b16 %v1261, %v1261
      %v1326 = vpack.c.b16 %v1262, %v1262
      %v1327 = vpack.c.b16 %v1263, %v1263
      %v1328 = vpack.c.b16 %v1264, %v1264
      %v1329 = vpack.c.b16 %v1265, %v1265
      %v1330 = vpack.c.b16 %v1266, %v1266
      %v1331 = vpack.c.b16 %v1267, %v1267
      %1396 = vst [vmem:[%s265] sm:$0xf] %v1268
      %1397 = vst [vmem:[%s265 + $0x4] sm:$0xf] %v1269
      %1398 = vst [vmem:[%s265 + $0x8] sm:$0xf] %v1270
      %1399 = vst [vmem:[%s265 + $0xc] sm:$0xf] %v1271
      %1400 = vst [vmem:[%s265 + $0x10] sm:$0xf] %v1272
      %1401 = vst [vmem:[%s265 + $0x14] sm:$0xf] %v1273
      %1402 = vst [vmem:[%s265 + $0x18] sm:$0xf] %v1274
      %1403 = vst [vmem:[%s265 + $0x1c] sm:$0xf] %v1275
      %1404 = vst [vmem:[%s265 + $0x20] sm:$0xf] %v1276
      %1405 = vst [vmem:[%s265 + $0x24] sm:$0xf] %v1277
      %1406 = vst [vmem:[%s265 + $0x28] sm:$0xf] %v1278
      %1407 = vst [vmem:[%s265 + $0x2c] sm:$0xf] %v1279
      %1408 = vst [vmem:[%s265 + $0x30] sm:$0xf] %v1280
      %1409 = vst [vmem:[%s265 + $0x34] sm:$0xf] %v1281
      %1410 = vst [vmem:[%s265 + $0x38] sm:$0xf] %v1282
      %1411 = vst [vmem:[%s265 + $0x3c] sm:$0xf] %v1283
      %1412 = vst [vmem:[%s265 + $0x40] sm:$0xf] %v1284
      %1413 = vst [vmem:[%s265 + $0x44] sm:$0xf] %v1285
      %1414 = vst [vmem:[%s265 + $0x48] sm:$0xf] %v1286
      %1415 = vst [vmem:[%s265 + $0x4c] sm:$0xf] %v1287
      %1416 = vst [vmem:[%s265 + $0x50] sm:$0xf] %v1288
      %1417 = vst [vmem:[%s265 + $0x54] sm:$0xf] %v1289
      %1418 = vst [vmem:[%s265 + $0x58] sm:$0xf] %v1290
      %1419 = vst [vmem:[%s265 + $0x5c] sm:$0xf] %v1291
      %1420 = vst [vmem:[%s265 + $0x60] sm:$0xf] %v1292
      %1421 = vst [vmem:[%s265 + $0x64] sm:$0xf] %v1293
      %1422 = vst [vmem:[%s265 + $0x68] sm:$0xf] %v1294
      %1423 = vst [vmem:[%s265 + $0x6c] sm:$0xf] %v1295
      %1424 = vst [vmem:[%s265 + $0x70] sm:$0xf] %v1296
      %1425 = vst [vmem:[%s265 + $0x74] sm:$0xf] %v1297
      %1426 = vst [vmem:[%s265 + $0x78] sm:$0xf] %v1298
      %1427 = vst [vmem:[%s265 + $0x7c] sm:$0xf] %v1299
      %1428 = vst [vmem:[%s265 + $0x80] sm:$0xf] %v1300
      %1429 = vst [vmem:[%s265 + $0x84] sm:$0xf] %v1301
      %1430 = vst [vmem:[%s265 + $0x88] sm:$0xf] %v1302
      %1431 = vst [vmem:[%s265 + $0x8c] sm:$0xf] %v1303
      %1432 = vst [vmem:[%s265 + $0x90] sm:$0xf] %v1304
      %1433 = vst [vmem:[%s265 + $0x94] sm:$0xf] %v1305
      %1434 = vst [vmem:[%s265 + $0x98] sm:$0xf] %v1306
      %1435 = vst [vmem:[%s265 + $0x9c] sm:$0xf] %v1307
      %1436 = vst [vmem:[%s265 + $0xa0] sm:$0xf] %v1308
      %1437 = vst [vmem:[%s265 + $0xa4] sm:$0xf] %v1309
      %1438 = vst [vmem:[%s265 + $0xa8] sm:$0xf] %v1310
      %1439 = vst [vmem:[%s265 + $0xac] sm:$0xf] %v1311
      %1440 = vst [vmem:[%s265 + $0xb0] sm:$0xf] %v1312
      %1441 = vst [vmem:[%s265 + $0xb4] sm:$0xf] %v1313
      %1442 = vst [vmem:[%s265 + $0xb8] sm:$0xf] %v1314
      %1443 = vst [vmem:[%s265 + $0xbc] sm:$0xf] %v1315
      %1444 = vst [vmem:[%s265 + $0xc0] sm:$0xf] %v1316
      %1445 = vst [vmem:[%s265 + $0xc4] sm:$0xf] %v1317
      %1446 = vst [vmem:[%s265 + $0xc8] sm:$0xf] %v1318
      %1447 = vst [vmem:[%s265 + $0xcc] sm:$0xf] %v1319
      %1448 = vst [vmem:[%s265 + $0xd0] sm:$0xf] %v1320
      %1449 = vst [vmem:[%s265 + $0xd4] sm:$0xf] %v1321
      %1450 = vst [vmem:[%s265 + $0xd8] sm:$0xf] %v1322
      %1451 = vst [vmem:[%s265 + $0xdc] sm:$0xf] %v1323
      %1452 = vst [vmem:[%s265 + $0xe0] sm:$0xf] %v1324
      %1453 = vst [vmem:[%s265 + $0xe4] sm:$0xf] %v1325
      %1454 = vst [vmem:[%s265 + $0xe8] sm:$0xf] %v1326
      %1455 = vst [vmem:[%s265 + $0xec] sm:$0xf] %v1327
      %1456 = vst [vmem:[%s265 + $0xf0] sm:$0xf] %v1328
      %1457 = vst [vmem:[%s265 + $0xf4] sm:$0xf] %v1329
      %1458 = vst [vmem:[%s265 + $0xf8] sm:$0xf] %v1330
      %1459 = vst [vmem:[%s265 + $0xfc] sm:$0xf] %v1331
      %s1460 = smul.u32 64, %s19
      %p1461 = scmp.lt.s32.totalorder %s1460, 127
      %s1462 = scalar_select %p1461, %s1460, 127
      %p1463 = scmp.lt.s32.totalorder %s20, 0
      %s1464 = scalar_select %p1463, %s20, 0
      %s1465 = sadd.s32 %s1464, %s1462
      %s1466 = smul.addr %s1465, 4
      %s1467 = scalar_lea.vmem %s3, %s1466
      // Predicated region
      $region33: #{_conv2d_impl.1} parent=31 // pred_check
        %p1468 = pneg %p135
      $region34: #{_conv2d_impl.1} parent=31 // pred_check_branch
        %1470 = sbr.rel (%p1468) target = $region36
      $region35: #{_conv2d_impl.1} parent=31 // pred_region
        %s1471 = smul.u32 64, %s19
      $region36: #{_conv2d_impl.1} parent=31 // pred_fallthru
        _
    $region32: #{_conv2d_impl.1} parent=5 // pred_fallthru
      _
    %p1472 = scmp.le.s32.totalorder 2, %s9
    // Predicated region
    $region37: #{_conv2d_impl.1} parent=5 // pred_check
      %p1473 = pneg %p1472
    $region38: #{_conv2d_impl.1} parent=5 // pred_check_branch
      %1475 = sbr.rel (%p1473) target = $region40
    $region39: #{_conv2d_impl.1} parent=5 // pred_region
      %s1476 = ssub.s32 %s9, 2
      // Predicated region
      $region41: #{_conv2d_impl.1} parent=39 // pred_check
        %p1477 = pneg %p141
      $region42: #{_conv2d_impl.1} parent=39 // pred_check_branch
        %1479 = sbr.rel (%p1477) target = $region44
      $region43: #{_conv2d_impl.1} parent=39 // pred_region
        %s1480 = smul.u32 64, %s22
        %p1481 = scmp.lt.s32.totalorder %s1480, 127
        %s1482 = scalar_select %p1481, %s1480, 127
        %p1483 = scmp.lt.s32.totalorder %s23, 0
        %s1484 = scalar_select %p1483, %s23, 0
        %s1485 = sadd.s32 %s1484, %s1482
        %s1486 = smul.addr %s1485, 4
        %s1487 = scalar_lea.vmem %s3, %s1486
      $region44: #{_conv2d_impl.1} parent=39 // pred_fallthru
        _
    $region40: #{_conv2d_impl.1} parent=5 // pred_fallthru
      _
  $region6: #{_conv2d_impl.1} parent=0 // loop_footer
    %s13 = sadd.s32 1, %s9
  $region7: #{_conv2d_impl.1} parent=0 // loop_footer_branch
    %8 = sbr.rel target = $region3
  $region8: #{_conv2d_impl.1} parent=0 // loop_exit
    _

</llo_original>
